<compile_context>
chip_gen: v7x
topology: tpu7x:2x2x1
jax: 0.10.0
libtpu: 0.0.40
codegen_flags: <defaults>
</compile_context>

<pallas_src>
import functools

import jax
import jax.numpy as jnp
from jax import lax
from jax.experimental import pallas as pl
from jax.experimental.pallas import tpu as pltpu


def _lse_partial_sum_kernel(logits_ref, out_ref, *,
                            n_rows: int, block_rows: int, tiles_per_split: int):
    """Accumulates the sum of per-row logsumexp for this partial split.

    logits_ref: (BN, C) in VMEM (any float dtype, up-cast to f32 here)
    out_ref:    (8, 128) f32 resident accumulator block for this partial split
                (every entry holds the same partial sum; wrapper reads [0, 0]).
    """
    p = pl.program_id(0)   # partial split (parallel; sharded across TCs on v7x)
    t = pl.program_id(1)   # batch tile within this split (reduction axis)

    @pl.when(t == 0)
    def _init():
        out_ref[...] = jnp.zeros_like(out_ref)

    x = logits_ref[...].astype(jnp.float32)                   # (BN, C)
    bn, _ = x.shape

    # Numerically stable per-row logsumexp.
    m = jnp.max(x, axis=-1, keepdims=True)                    # (BN, 1)
    lse = jnp.log(jnp.sum(jnp.exp(x - m), axis=-1, keepdims=True)) + m

    # Mask rows past the true batch size (ragged final tile).
    row_ids = lax.broadcasted_iota(jnp.int32, (bn, 1), 0)
    global_rows = (p * tiles_per_split + t) * block_rows + row_ids
    lse = jnp.where(global_rows < n_rows, lse, 0.0)

    # Accumulate this tile's logsumexp sum into the resident lane-dense block
    # (the (1, 1) tile sum broadcasts over the (8, 128) block).
    out_ref[...] += jnp.sum(lse, axis=0, keepdims=True)


def focal_loss(logits: jax.Array, targets: jax.Array, *, gamma: float = 0.0,
               eps: float = 1e-7, block_rows: int | None = None,
               num_partials: int | None = None) -> jax.Array:
    """Pallas implementation of FocalLoss.forward. Returns a scalar.

    logits:  (N, C) float (f32 or bf16 — streamed as-is, up-cast in-kernel)
    targets: (N,)   int class indices
    """
    del eps  # defined in the PyTorch module but never used in forward.
    n, c = logits.shape
    itemsize = jnp.dtype(logits.dtype).itemsize

    # --- generation detection (fail-safe: conservative single-TC defaults).
    try:
        device_kind = jax.devices()[0].device_kind.lower()
    except Exception:  # pragma: no cover - detection must never break the op.
        device_kind = ""
    is_v7 = "v7" in device_kind
    # v7x has 64 MiB physical VMEM per TC -> cap the scoped limit at 48 MiB;
    # v5e/v6e have 128 MiB -> 64 MiB limit leaves ample headroom.
    vmem_limit = (48 if is_v7 else 64) * 1024 * 1024
    if num_partials is None:
        num_partials = 2 if is_v7 else 1   # 2 TCs on v7x, 1 TC on v5e/v6e.

    # --- pick a batch tile: target ~6 MiB per logits buffer (double-buffered),
    # bounded by a VMEM budget that also accounts for the f32 upcast and exp
    # temporaries (~3x the tile in f32).
    min_rows = max(8, 32 // itemsize)        # sublane minimum: 8 f32, 16 bf16.
    if block_rows is None:
        desired = max(1, (6 * 1024 * 1024) // max(1, c * itemsize))
        per_row_bytes = c * (2 * itemsize + 3 * 4)   # 2x input bufs + ~3x f32 temps
        cap = max(1, (3 * vmem_limit // 4) // max(1, per_row_bytes))
        bn = min(desired, cap)
    else:
        bn = int(block_rows)
    if bn >= n:
        bn = n                               # full-dim block is always legal.
    else:
        bn = max(min_rows, bn - (bn % min_rows))
        bn = min(bn, n)

    total_tiles = int(pl.cdiv(n, bn))
    # Exact partial split: only use p partials if p divides the tile count, so
    # the index_map never steps past cdiv(N, bn) (no clamped/redundant DMAs).
    p_eff = 1
    for p_try in range(min(max(1, int(num_partials)), total_tiles), 0, -1):
        if total_tiles % p_try == 0:
            p_eff = p_try
            break
    tiles_per_split = total_tiles // p_eff

    kernel = functools.partial(_lse_partial_sum_kernel, n_rows=n, block_rows=bn,
                               tiles_per_split=tiles_per_split)

    partials = pl.pallas_call(
        kernel,
        out_shape=jax.ShapeDtypeStruct((p_eff * 8, 128), jnp.float32),
        grid_spec=pltpu.PrefetchScalarGridSpec(
            num_scalar_prefetch=0,
            grid=(p_eff, tiles_per_split),
            in_specs=[
                pl.BlockSpec((bn, c), lambda p, t: (p * tiles_per_split + t, 0)),
            ],
            out_specs=pl.BlockSpec((8, 128), lambda p, t: (p, 0)),
        ),
        compiler_params=pltpu.CompilerParams(
            dimension_semantics=("parallel", "arbitrary"),
            vmem_limit_bytes=vmem_limit),
    )(logits)

    # --- O(N) target-logit gather + scalar focal epilogue in plain JAX
    # (tiny vs. the N*C streaming pass; keeps the hot loop HBM-bound).
    lse_sum = jnp.sum(partials.reshape(p_eff, 8, 128)[:, 0, 0])
    tgt_idx = targets.astype(jnp.int32)[:, None]
    tgt_logits = jnp.take_along_axis(logits, tgt_idx, axis=-1)[:, 0]
    tgt_sum = jnp.sum(tgt_logits.astype(jnp.float32))

    logp = (lse_sum - tgt_sum) / n           # mean cross-entropy
    p_t = jnp.exp(-logp)
    base = jnp.maximum(1.0 - p_t, 0.0)       # clamp: fp rounding can make 1-p < 0
    g = float(gamma)
    if g == int(g) and g >= 0:
        mod = lax.integer_pow(base, int(g))  # repeated multiply, no exp/log pow
    else:
        mod = base ** g
    return (mod * logp).astype(jnp.float32)


def _focal_loss_ref(logits, targets, gamma):
    # Pure-JAX reference mirroring torch.nn.CrossEntropyLoss + focal wrapper.
    logZ = jax.nn.logsumexp(logits.astype(jnp.float32), axis=-1)
    tgt_logit = jnp.take_along_axis(logits.astype(jnp.float32),
                                    targets[:, None], axis=-1)[:, 0]
    logp = jnp.mean(logZ - tgt_logit)
    p = jnp.exp(-logp)
    return (1.0 - p) ** gamma * logp


if __name__ == "__main__":
    key = jax.random.PRNGKey(0)
    k1, k2, k3, k4, k5, k6 = jax.random.split(key, 6)
    gamma = 2.0

    # Small case consistent with the module: batch=8 samples, 32 classes.
    N, C = 8, 32
    logits = jax.random.normal(k1, (N, C), dtype=jnp.float32)
    targets = jax.random.randint(k2, (N,), 0, C, dtype=jnp.int32)
    loss = focal_loss(logits, targets, gamma=gamma)
    jax.block_until_ready(loss)
    ref = _focal_loss_ref(logits, targets, gamma)
    assert jnp.allclose(loss, ref, rtol=1e-5, atol=1e-5), (loss, ref)

    # Tiled path: multiple batch tiles per partial + explicit 2-way split.
    N2, C2 = 256, 128
    logits2 = jax.random.normal(k3, (N2, C2), dtype=jnp.float32)
    targets2 = jax.random.randint(k4, (N2,), 0, C2, dtype=jnp.int32)
    loss2 = focal_loss(logits2, targets2, gamma=gamma, block_rows=64, num_partials=2)
    jax.block_until_ready(loss2)
    ref2 = _focal_loss_ref(logits2, targets2, gamma)
    assert jnp.allclose(loss2, ref2, rtol=1e-5, atol=1e-5), (loss2, ref2)

    # bf16 streaming path (streamed as-is, up-cast to f32 inside VMEM).
    N3, C3 = 64, 128
    logits3 = jax.random.normal(k5, (N3, C3), dtype=jnp.float32).astype(jnp.bfloat16)
    targets3 = jax.random.randint(k6, (N3,), 0, C3, dtype=jnp.int32)
    loss3 = focal_loss(logits3, targets3, gamma=gamma)
    jax.block_until_ready(loss3)
    ref3 = _focal_loss_ref(logits3, targets3, gamma)
    assert jnp.allclose(loss3, ref3, rtol=1e-3, atol=1e-3), (loss3, ref3)

    print("KERNEL_OK")
</pallas_src>

<mosaic_0001>
module attributes {stable_mosaic.version = 11 : i64} {
  func.func @_lse_partial_sum_kernel(%arg0: i32, %arg1: i32, %arg2: memref<8x32xf32, #tpu.memory_space<vmem>>, %arg3: memref<8x128xf32, #tpu.memory_space<vmem>>) attributes {dimension_semantics = [#tpu.dimension_semantics<parallel>, #tpu.dimension_semantics<arbitrary>], iteration_bounds = array<i64: 1, 1>, scalar_prefetch = 0 : i64, scratch_operands = 0 : i64, tpu.core_type = #tpu.core_type<tc>, window_params = [{transform_indices = @transform_0, window_bounds = array<i64: 8, 32>}, {transform_indices = @transform_1, window_bounds = array<i64: 8, 128>}]} {
    %c0_i32 = arith.constant 0 : i32
    %0 = arith.cmpi eq, %arg1, %c0_i32 : i32
    %1 = arith.extui %0 : i1 to i32
    %c0_i32_0 = arith.constant 0 : i32
    %2 = arith.cmpi ne, %1, %c0_i32_0 : i32
    scf.if %2 {
      %cst_10 = arith.constant 0.000000e+00 : f32
      %29 = vector.broadcast %cst_10 : f32 to vector<8x128xf32>
      %c0_11 = arith.constant 0 : index
      %c0_12 = arith.constant 0 : index
      %30 = vector.load %arg3[%c0_11, %c0_12] : memref<8x128xf32, #tpu.memory_space<vmem>>, vector<8x128xf32>
      tpu.vector_store %arg3[%c0_11, %c0_12], %29 {strides = array<i32>} : memref<8x128xf32, #tpu.memory_space<vmem>>, vector<8x128xf32>,
    } else {
    }
    %c0 = arith.constant 0 : index
    %c0_1 = arith.constant 0 : index
    %3 = vector.load %arg2[%c0, %c0_1] : memref<8x32xf32, #tpu.memory_space<vmem>>, vector<8x32xf32>
    %cst = arith.constant dense<0xFF800000> : vector<8xf32>
    %4 = vector.multi_reduction <maximumf>, %3, %cst [1] : vector<8x32xf32> to vector<8xf32>
    %5 = vector.shape_cast %4 : vector<8xf32> to vector<8x1xf32>
    %6 = vector.broadcast %5 : vector<8x1xf32> to vector<8x32xf32>
    %7 = arith.subf %3, %6 : vector<8x32xf32>
    %8 = math.exp %7 : vector<8x32xf32>
    %cst_2 = arith.constant dense<0.000000e+00> : vector<8xf32>
    %9 = vector.multi_reduction <add>, %8, %cst_2 [1] : vector<8x32xf32> to vector<8xf32>
    %10 = vector.shape_cast %9 : vector<8xf32> to vector<8x1xf32>
    %11 = math.log %10 : vector<8x1xf32>
    %12 = arith.addf %11, %5 : vector<8x1xf32>
    %13 = tpu.iota {dimensions = array<i32: 0>} : vector<8x1xi32>
    %c1_i32 = arith.constant 1 : i32
    %14 = arith.muli %arg0, %c1_i32 : i32
    %15 = arith.addi %14, %arg1 : i32
    %c8_i32 = arith.constant 8 : i32
    %16 = arith.muli %15, %c8_i32 : i32
    %17 = vector.broadcast %16 : i32 to vector<8x1xi32>
    %18 = arith.addi %17, %13 : vector<8x1xi32>
    %c8_i32_3 = arith.constant 8 : i32
    %19 = vector.broadcast %c8_i32_3 : i32 to vector<8x1xi32>
    %20 = arith.cmpi slt, %18, %19 : vector<8x1xi32>
    %cst_4 = arith.constant 0.000000e+00 : f32
    %21 = vector.broadcast %cst_4 : f32 to vector<8x1xf32>
    %22 = arith.select %20, %12, %21 : vector<8x1xi1>, vector<8x1xf32>
    %c0_5 = arith.constant 0 : index
    %c0_6 = arith.constant 0 : index
    %23 = vector.load %arg3[%c0_5, %c0_6] : memref<8x128xf32, #tpu.memory_space<vmem>>, vector<8x128xf32>
    %cst_7 = arith.constant dense<0.000000e+00> : vector<1xf32>
    %24 = vector.multi_reduction <add>, %22, %cst_7 [0] : vector<8x1xf32> to vector<1xf32>
    %25 = vector.shape_cast %24 : vector<1xf32> to vector<1x1xf32>
    %26 = vector.broadcast %25 : vector<1x1xf32> to vector<8x128xf32>
    %27 = arith.addf %23, %26 : vector<8x128xf32>
    %c0_8 = arith.constant 0 : index
    %c0_9 = arith.constant 0 : index
    %28 = vector.load %arg3[%c0_8, %c0_9] : memref<8x128xf32, #tpu.memory_space<vmem>>, vector<8x128xf32>
    tpu.vector_store %arg3[%c0_8, %c0_9], %27 {strides = array<i32>} : memref<8x128xf32, #tpu.memory_space<vmem>>, vector<8x128xf32>,
    return
  }
  func.func @transform_0(%arg0: i32, %arg1: i32) -> (i32, i32) {
    %c1_i32 = arith.constant 1 : i32
    %0 = arith.muli %arg0, %c1_i32 : i32
    %1 = arith.addi %0, %arg1 : i32
    %c0_i32 = arith.constant 0 : i32
    %c0_i32_0 = arith.constant 0 : i32
    return %1, %c0_i32 : i32, i32
  }
  func.func @transform_1(%arg0: i32, %arg1: i32) -> (i32, i32) {
    %c0_i32 = arith.constant 0 : i32
    %c0_i32_0 = arith.constant 0 : i32
    return %arg0, %c0_i32 : i32, i32
  }
}

</mosaic_0001>

<llo_original>
// kernel: tpu_custom_call.1
$region0: #{tpu_custom_call.1}
  #allocation0 [shape = 'u32[]', space=smem, size = 0x4, offset = 0x4, fixed_abs, tag = 'smem constant byte address 0x4 - core index']
  #allocation1 [shape = 'u32[144,128]{1,0:T(1,128)}', space=vmem, size = 0x12000, scoped, tag = 'internal scratch']
  %s0 = inlined_call_operand.hbm [shape: f32[8,32], index: 0, kind: input, shape index: {}]
  %s1 = inlined_call_operand.hbm [shape: f32[8,128], index: 1, kind: output, shape index: {}]
  %s2 = sld [smem:[#allocation0]]
  $region22: #{tpu_custom_call.1} parent=0
    _
  %s4 = ssub.s32 1, %s2
  %s5 = scalar_select 0, %s4, %s2
  $region1: #{tpu_custom_call.1} parent=0
    #allocation2 [shape = 'u8[4096]{0}', space=vmem, size = 0x1000, scoped, tag = 'input window, operand 0, single buffered']
    #allocation3 [shape = 's32[1]{0}', space=sflag, size = 0x4, scoped, tag = 'scoped memory for tpu_custom_call.1']
    #allocation4 [shape = 's32[1]{0}', space=sflag, size = 0x4, scoped, tag = 'scoped memory for tpu_custom_call.1']
    #allocation5 [shape = 'u8[4096]{0}', space=vmem, size = 0x1000, scoped, tag = 'output window, operand 0, single buffered']
    %6 = vsyncpa [#allocation3], 0
    %7 = vsyncpa [#allocation4], 0
    // Predicated region
    $region2: #{tpu_custom_call.1} parent=1 // pred_check
      _
    $region3: #{tpu_custom_call.1} parent=1 // pred_check_branch
      %9 = sbr.rel (0) target = $region5
    $region4: #{tpu_custom_call.1} parent=1 // pred_region
      %s10 = sadd.s32 0, 0
      %s12 = ssub.s32 128, 128
      %13 = vsyncadd [#allocation3], %s12
      %s14 = smul.addr %s10, 128
      %s15 = scalar_lea.hbm %s0, %s14
      %s17 = sshll.u32 [#allocation2], 4
      %s18 = int_to_ptr.vmem [resolvable:$true] %s17
      %20 = dma.hbm_to_vmem [thread:$0]  %s15, 128, %s18, [#allocation3]
    $region5: #{tpu_custom_call.1} parent=1 // pred_fallthru
      _
    // Predicated region
    $region6: #{tpu_custom_call.1} parent=1 // pred_check
      _
    $region7: #{tpu_custom_call.1} parent=1 // pred_check_branch
      %22 = sbr.rel (0) target = $region9
    $region8: #{tpu_custom_call.1} parent=1 // pred_region
      %23 = dma.done [#allocation3], 128
    $region9: #{tpu_custom_call.1} parent=1 // pred_fallthru
      _
    %s24 = sadd.s32 0, 0
    %p25 = scmp.eq.s32.totalorder 0, 0
    // Predicated region
    $region10: #{tpu_custom_call.1} parent=1 // pred_check
      %p26 = pneg %p25
    $region11: #{tpu_custom_call.1} parent=1 // pred_check_branch
      %28 = sbr.rel (%p26) target = $region13
    $region12: #{tpu_custom_call.1} parent=1 // pred_region
      %29 = vst [vmem:[#allocation5] sm:$0xff] 0.0
    $region13: #{tpu_custom_call.1} parent=1 // pred_fallthru
      _
    %v30 = vld [vmem:[#allocation2] sm:$0xff]
    %vm31 = vcmask 261120
    %v32 = vsel %vm31, %v30, -inf
    %33 = vmax.xlane.f32.xlu0 %v32
    %v34 = vpop.xlane.xlu0 %33
    %v35 = vsub.f32 %v30, %v34
    %v36 = vmul.f32 %v35, 1.442695
    %v37 = vpow.pop %v36
    %v38 = vsel %vm31, %v37, 0.0
    %39 = vadd.xlane.f32.xlu0 %v38
    %v40 = vpop.xlane.xlu0 %39
    %v41 = vlog2.pop %v40
    %v42 = vmul.f32 %v41, 0.6931472
    %v43 = vadd.f32 %v42, %v34
    %v44 = vlaneseq
    %v45 = vshrl.u32 %v44, 7
    %s46 = sadd.s32 0, 0
    %s47 = smul.u32 %s46, 8
    %v48 = vstv %s47
    %v49 = vadd.s32 %v48, %v45
    %vm50 = vcmp.lt.s32.totalorder %v49, 8
    %v51 = vsel %vm50, %v43, 0.0
    %v52 = vld [vmem:[#allocation5] sm:$0xff]
    %v53 = vrot.slane %v51, 4
    %v54 = vadd.f32 %v51, %v53
    %v55 = vrot.slane %v54, 2
    %v56 = vadd.f32 %v54, %v55
    %v57 = vrot.slane %v56, 1
    %v58 = vadd.f32 %v56, %v57
    %v59 = vadd.f32 %v52, %v58
    %60 = vst [vmem:[#allocation5] sm:$0xff] %v59
    // Predicated region
    $region14: #{tpu_custom_call.1} parent=1 // pred_check
      _
    $region15: #{tpu_custom_call.1} parent=1 // pred_check_branch
      %62 = sbr.rel (0) target = $region17
    $region16: #{tpu_custom_call.1} parent=1 // pred_region
      %s64 = ssub.s32 128, 128
      %65 = vsyncadd [#allocation4], %s64
      %s67 = sshll.u32 [#allocation5], 4
      %s68 = int_to_ptr.vmem [resolvable:$true] %s67
      %70 = dma.vmem_to_hbm [thread:$0]  %s68, 128, %s1, [#allocation4]
    $region17: #{tpu_custom_call.1} parent=1 // pred_fallthru
      _
    // Predicated region
    $region18: #{tpu_custom_call.1} parent=1 // pred_check
      _
    $region19: #{tpu_custom_call.1} parent=1 // pred_check_branch
      %72 = sbr.rel (0) target = $region21
    $region20: #{tpu_custom_call.1} parent=1 // pred_region
      %73 = dma.done [#allocation4], 128
    $region21: #{tpu_custom_call.1} parent=1 // pred_fallthru
      _
    %74 = vsyncpa [#allocation3], 1
    %75 = vsyncpa [#allocation4], 1

</llo_original>
